<compile_context>
chip_gen: v6e
topology: v6e:2x2x1
jax: 0.10.0
libtpu: 0.0.40
codegen_flags: <defaults>
</compile_context>

<pallas_src>
import jax
import jax.numpy as jnp
from jax import lax
from jax.experimental import pallas as pl
from jax.experimental.pallas import tpu as pltpu


def _round_up(x: int, m: int) -> int:
    return ((x + m - 1) // m) * m


def _vmem_capacity_bytes() -> int:
    try:
        info = pltpu.get_tpu_info()
        cap = getattr(info, "vmem_capacity_bytes", None)
        if cap:
            return int(cap)
    except Exception:
        pass
    return 64 * 1024 * 1024  # conservative: v7x per-TC; v5e/v6e have 128 MiB


def prepare_ffn_weights(w1, b1, w2, b2):
    """One-time weight prep (outside the hot path; amortized over calls).

    w1: (d_ff, d_model), b1: (d_ff,)      -- nn.Linear(d_model, d_ff) layout
    w2: (d_model, d_ff), b2: (d_model,)   -- nn.Linear(d_ff, d_model) layout
    Returns (w1, b1, w2t, b2) with w2t = w2.T of shape (d_ff, d_model).
    """
    return w1, b1, jnp.transpose(w2), b2


# ---------------------------------------------------------------------------
# Kernels
# ---------------------------------------------------------------------------

def ffn_kernel_resident(x_ref, w1_ref, b1_ref, w2t_ref, b2_ref, o_ref):
    # Weights fully VMEM-resident: single d_ff chunk, no accumulator scratch.
    # x_ref: (tm, d_model)  w1_ref: (d_ff, d_model)  b1_ref: (1, d_ff)
    # w2t_ref: (d_ff, d_model)  b2_ref: (1, d_model)  o_ref: (tm, d_model)
    h = lax.dot_general(x_ref[...], w1_ref[...],
                        (((1,), (1,)), ((), ())),
                        preferred_element_type=jnp.float32)
    h = jnp.maximum(h + b1_ref[...].astype(jnp.float32), 0.0)
    y = jnp.dot(h.astype(w2t_ref.dtype), w2t_ref[...],
                preferred_element_type=jnp.float32)
    o_ref[...] = (y + b2_ref[...].astype(jnp.float32)).astype(o_ref.dtype)


def ffn_kernel_chunked(x_ref, w1_ref, b1_ref, w2t_ref, b2_ref, o_ref, acc_ref):
    # x_ref: (tm, d_model)  w1_ref: (tff, d_model)  b1_ref: (1, tff)
    # w2t_ref: (tff, d_model)  b2_ref: (1, d_model)
    # o_ref: (tm, d_model)  acc_ref: (tm, d_model) f32 scratch
    k = pl.program_id(1)

    @pl.when(k == 0)
    def _():
        acc_ref[...] = jnp.zeros_like(acc_ref)

    # h_chunk = relu(x @ w1_chunk.T + b1_chunk), f32 accumulation on the MXU.
    h = lax.dot_general(x_ref[...], w1_ref[...],
                        (((1,), (1,)), ((), ())),
                        preferred_element_type=jnp.float32)
    h = jnp.maximum(h + b1_ref[...].astype(jnp.float32), 0.0)

    # acc += h_chunk @ w2t_chunk   (standard (M,K)x(K,N) orientation).
    acc_ref[...] += jnp.dot(h.astype(w2t_ref.dtype), w2t_ref[...],
                            preferred_element_type=jnp.float32)

    @pl.when(k == pl.num_programs(1) - 1)
    def _():
        o_ref[...] = (acc_ref[...] + b2_ref[...].astype(jnp.float32)
                      ).astype(o_ref.dtype)


# ---------------------------------------------------------------------------
# Wrapper
# ---------------------------------------------------------------------------

def baseline_ffn(x, w1, b1, w2t, b2, *, tm=None, tff=None, vmem_limit_bytes=None):
    """BaselineFFN eval-mode forward: w2(relu(w1(x)))  (dropout = identity).

    x  : (B, S, d_model)
    w1 : (d_ff, d_model)    -- nn.Linear(d_model, d_ff).weight
    b1 : (d_ff,)
    w2t: (d_ff, d_model)    -- nn.Linear(d_ff, d_model).weight transposed once
                               via prepare_ffn_weights (not per call)
    b2 : (d_model,)
    tm / tff / vmem_limit_bytes: optional overrides; by default they are
    derived from the VMEM capacity of the local TPU generation.
    """
    B, S, d_model = x.shape
    d_ff = w1.shape[0]
    assert w1.shape == (d_ff, d_model)
    assert w2t.shape == (d_ff, d_model)
    M = B * S

    x_bytes = jnp.dtype(x.dtype).itemsize
    w_bytes = jnp.dtype(w1.dtype).itemsize
    cap = _vmem_capacity_bytes()
    budget = int(cap * 0.7)  # headroom for Mosaic internal matmul scratch etc.

    def est(t_m, t_f):
        e = 0
        e += 2 * t_m * d_model * x_bytes                 # x (double-buffered)
        e += 2 * t_m * d_model * x_bytes                 # out (double-buffered)
        e += 2 * 2 * t_f * d_model * w_bytes             # w1 + w2t (double-buffered)
        e += 2 * (max(t_f, 128) + max(d_model, 128)) * 4 # biases (lane-padded)
        e += t_m * t_f * (4 + w_bytes)                   # h f32 + cast copy
        e += t_m * d_model * 4                           # f32 accumulator
        return e

    # ---- row tile ----------------------------------------------------------
    m16 = _round_up(M, 16)
    tm = 512 if tm is None else tm
    tm = min(tm, m16)
    # >= 2 M tiles so the 'parallel' axis can shard across both v7x TensorCores.
    if M > 256 and pl.cdiv(m16, tm) < 2:
        tm = _round_up(pl.cdiv(m16, 2), 16)

    # ---- d_ff chunk: prefer full weight residency, else a 128-multiple
    # divisor of d_ff (so no per-call weight padding is ever needed). ---------
    if tff is None:
        if d_ff <= 128 or est(tm, d_ff) <= budget:
            tff = d_ff
        else:
            divs = [c for c in range(128, d_ff, 128) if d_ff % c == 0]
            tff = None
            for c in sorted(divs, reverse=True):
                if est(tm, c) <= budget:
                    tff = c
                    break
            if tff is None:
                tff = min(divs) if divs else d_ff
    if d_ff <= tff:
        tff = d_ff
    if tff < d_ff:
        assert tff % 128 == 0, "d_ff chunk must be lane-aligned (multiple of 128)"

    # Shrink tm if the chosen tiles still miss the budget (small-VMEM parts).
    while est(tm, tff) > budget and tm > 128:
        tm = max(128, _round_up(tm // 2, 16))

    m_pad = _round_up(M, tm)
    f_pad = _round_up(d_ff, tff)
    num_k = f_pad // tff
    m_tiles = m_pad // tm

    x2 = x.reshape(M, d_model)
    if m_pad != M:
        x2 = jnp.pad(x2, ((0, m_pad - M), (0, 0)))
    if f_pad != d_ff:
        # Fallback only (auto-selected tff always divides d_ff). Exact:
        # relu(0 + 0) = 0 and padded w2t rows are zero.
        w1 = jnp.pad(w1, ((0, f_pad - d_ff), (0, 0)))
        b1 = jnp.pad(b1, ((0, f_pad - d_ff),))
        w2t = jnp.pad(w2t, ((0, f_pad - d_ff), (0, 0)))

    b1r = b1.reshape(1, f_pad)
    b2r = b2.reshape(1, d_model)

    if vmem_limit_bytes is None:
        vmem_limit_bytes = min(int(cap * 0.9),
                               max(est(tm, tff) + (16 << 20), 32 << 20))

    cost = pl.CostEstimate(
        flops=4 * m_pad * d_model * f_pad,
        transcendentals=0,
        bytes_accessed=int(2 * m_pad * d_model * x_bytes
                           + 2 * f_pad * d_model * w_bytes
                           + (f_pad + d_model) * jnp.dtype(b1.dtype).itemsize),
    )

    if num_k == 1:
        # Weight-resident fast path: 1-D grid over M tiles. Weight / bias block
        # indices are constant, so each weight is DMA'd from HBM exactly once.
        out = pl.pallas_call(
            ffn_kernel_resident,
            out_shape=jax.ShapeDtypeStruct((m_pad, d_model), x.dtype),
            grid_spec=pltpu.PrefetchScalarGridSpec(
                num_scalar_prefetch=0,
                grid=(m_tiles,),
                in_specs=[
                    pl.BlockSpec((tm, d_model), lambda i: (i, 0)),     # x rows
                    pl.BlockSpec((f_pad, d_model), lambda i: (0, 0)),  # w1
                    pl.BlockSpec((1, f_pad), lambda i: (0, 0)),        # b1
                    pl.BlockSpec((f_pad, d_model), lambda i: (0, 0)),  # w2t
                    pl.BlockSpec((1, d_model), lambda i: (0, 0)),      # b2
                ],
                out_specs=pl.BlockSpec((tm, d_model), lambda i: (i, 0)),
            ),
            compiler_params=pltpu.CompilerParams(
                dimension_semantics=("parallel",),
                vmem_limit_bytes=int(vmem_limit_bytes)),
            cost_estimate=cost,
        )(x2, w1, b1r, w2t, b2r)
    else:
        out = pl.pallas_call(
            ffn_kernel_chunked,
            out_shape=jax.ShapeDtypeStruct((m_pad, d_model), x.dtype),
            grid_spec=pltpu.PrefetchScalarGridSpec(
                num_scalar_prefetch=0,
                grid=(m_tiles, num_k),
                in_specs=[
                    pl.BlockSpec((tm, d_model), lambda i, k: (i, 0)),    # x rows
                    pl.BlockSpec((tff, d_model), lambda i, k: (k, 0)),   # w1 chunk
                    pl.BlockSpec((1, tff), lambda i, k: (0, k)),         # b1 chunk
                    pl.BlockSpec((tff, d_model), lambda i, k: (k, 0)),   # w2t chunk
                    pl.BlockSpec((1, d_model), lambda i, k: (0, 0)),     # b2
                ],
                # Output block index ignores k -> VMEM-resident accumulator
                # across the d_ff reduction; written once on the last chunk.
                out_specs=pl.BlockSpec((tm, d_model), lambda i, k: (i, 0)),
                scratch_shapes=[pltpu.VMEM((tm, d_model), jnp.float32)],
            ),
            compiler_params=pltpu.CompilerParams(
                dimension_semantics=("parallel", "arbitrary"),
                vmem_limit_bytes=int(vmem_limit_bytes)),
            cost_estimate=cost,
        )(x2, w1, b1r, w2t, b2r)

    if m_pad != M:
        out = out[:M]
    return out.reshape(B, S, d_model)


def _ffn_ref(x, w1, b1, w2, b2):
    x32 = x.astype(jnp.float32)
    h = jnp.maximum(x32 @ w1.astype(jnp.float32).T + b1.astype(jnp.float32), 0.0)
    return h @ w2.astype(jnp.float32).T + b2.astype(jnp.float32)


if __name__ == "__main__":
    key = jax.random.PRNGKey(0)

    # ---- Test 1: small f32, weight-resident single-chunk path --------------
    B, S, d_model, d_ff = 2, 8, 32, 64
    kx, kw1, kb1, kw2, kb2, k2 = jax.random.split(key, 6)
    x = jax.random.normal(kx, (B, S, d_model), dtype=jnp.float32)
    w1 = jax.random.normal(kw1, (d_ff, d_model), dtype=jnp.float32) * 0.1
    b1 = jax.random.normal(kb1, (d_ff,), dtype=jnp.float32) * 0.1
    w2 = jax.random.normal(kw2, (d_model, d_ff), dtype=jnp.float32) * 0.1
    b2 = jax.random.normal(kb2, (d_model,), dtype=jnp.float32) * 0.1

    params = prepare_ffn_weights(w1, b1, w2, b2)   # one-time, outside hot path
    out = jax.block_until_ready(baseline_ffn(x, *params))
    ref = _ffn_ref(x, w1, b1, w2, b2)
    assert out.shape == (B, S, d_model)
    assert jnp.allclose(out, ref, atol=1e-5, rtol=1e-5)

    # ---- Test 2: bf16, forced multi-chunk d_ff reduction + row padding -----
    B2, S2, dm2, dff2 = 2, 37, 128, 512            # M=74 -> padded to 80 rows
    kx, kw1, kb1, kw2, kb2 = jax.random.split(k2, 5)
    x_b = jax.random.normal(kx, (B2, S2, dm2), dtype=jnp.float32).astype(jnp.bfloat16)
    w1_b = (jax.random.normal(kw1, (dff2, dm2), dtype=jnp.float32) * 0.1).astype(jnp.bfloat16)
    b1_b = (jax.random.normal(kb1, (dff2,), dtype=jnp.float32) * 0.1).astype(jnp.bfloat16)
    w2_b = (jax.random.normal(kw2, (dm2, dff2), dtype=jnp.float32) * 0.1).astype(jnp.bfloat16)
    b2_b = (jax.random.normal(kb2, (dm2,), dtype=jnp.float32) * 0.1).astype(jnp.bfloat16)

    params_b = prepare_ffn_weights(w1_b, b1_b, w2_b, b2_b)
    ref_b = _ffn_ref(x_b, w1_b, b1_b, w2_b, b2_b)

    out_chunked = jax.block_until_ready(baseline_ffn(x_b, *params_b, tff=128))
    assert out_chunked.shape == (B2, S2, dm2)
    assert jnp.allclose(out_chunked.astype(jnp.float32), ref_b, atol=1e-1, rtol=1e-1)

    # ---- Test 3: same bf16 data through the auto weight-resident path ------
    out_auto = jax.block_until_ready(baseline_ffn(x_b, *params_b))
    assert out_auto.shape == (B2, S2, dm2)
    assert jnp.allclose(out_auto.astype(jnp.float32), ref_b, atol=1e-1, rtol=1e-1)

    print("KERNEL_OK")
</pallas_src>

<mosaic_0001>
module attributes {stable_mosaic.version = 11 : i64} {
  func.func @ffn_kernel_resident(%arg0: i32, %arg1: memref<16x32xf32, #tpu.memory_space<vmem>>, %arg2: memref<64x32xf32, #tpu.memory_space<vmem>>, %arg3: memref<1x64xf32, #tpu.memory_space<vmem>>, %arg4: memref<64x32xf32, #tpu.memory_space<vmem>>, %arg5: memref<1x32xf32, #tpu.memory_space<vmem>>, %arg6: memref<16x32xf32, #tpu.memory_space<vmem>>) attributes {dimension_semantics = [#tpu.dimension_semantics<parallel>], iteration_bounds = array<i64: 1>, scalar_prefetch = 0 : i64, scratch_operands = 0 : i64, tpu.core_type = #tpu.core_type<tc>, window_params = [{transform_indices = @transform_0, window_bounds = array<i64: 16, 32>}, {pipeline_mode = #tpu.pipeline_mode<synchronous>, transform_indices = @transform_1, window_bounds = array<i64: 64, 32>}, {pipeline_mode = #tpu.pipeline_mode<synchronous>, transform_indices = @transform_2, window_bounds = array<i64: 1, 64>}, {pipeline_mode = #tpu.pipeline_mode<synchronous>, transform_indices = @transform_3, window_bounds = array<i64: 64, 32>}, {pipeline_mode = #tpu.pipeline_mode<synchronous>, transform_indices = @transform_4, window_bounds = array<i64: 1, 32>}, {transform_indices = @transform_5, window_bounds = array<i64: 16, 32>}]} {
    %c0 = arith.constant 0 : index
    %c0_0 = arith.constant 0 : index
    %0 = vector.load %arg1[%c0, %c0_0] : memref<16x32xf32, #tpu.memory_space<vmem>>, vector<16x32xf32>
    %c0_1 = arith.constant 0 : index
    %c0_2 = arith.constant 0 : index
    %1 = vector.load %arg2[%c0_1, %c0_2] : memref<64x32xf32, #tpu.memory_space<vmem>>, vector<64x32xf32>
    %cst = arith.constant dense<0.000000e+00> : vector<16x64xf32>
    %2 = tpu.matmul %0, %1, %cst {dimension_numbers = #tpu.dot_dimension_numbers<[1], [1], [0], [0], [0, 0, 1, 0], [], []>} : vector<16x32xf32>, vector<64x32xf32>, vector<16x64xf32> -> vector<16x64xf32>
    %c0_3 = arith.constant 0 : index
    %c0_4 = arith.constant 0 : index
    %3 = vector.load %arg3[%c0_3, %c0_4] : memref<1x64xf32, #tpu.memory_space<vmem>>, vector<1x64xf32>
    %4 = vector.broadcast %3 : vector<1x64xf32> to vector<16x64xf32>
    %5 = arith.addf %2, %4 : vector<16x64xf32>
    %cst_5 = arith.constant 0.000000e+00 : f32
    %6 = vector.broadcast %cst_5 : f32 to vector<16x64xf32>
    %7 = arith.maximumf %5, %6 : vector<16x64xf32>
    %c0_6 = arith.constant 0 : index
    %c0_7 = arith.constant 0 : index
    %8 = vector.load %arg4[%c0_6, %c0_7] : memref<64x32xf32, #tpu.memory_space<vmem>>, vector<64x32xf32>
    %cst_8 = arith.constant dense<0.000000e+00> : vector<16x32xf32>
    %9 = tpu.matmul %7, %8, %cst_8 {dimension_numbers = #tpu.dot_dimension_numbers<[1], [0], [0], [1], [0, 0, 1, 1], [], []>} : vector<16x64xf32>, vector<64x32xf32>, vector<16x32xf32> -> vector<16x32xf32>
    %c0_9 = arith.constant 0 : index
    %c0_10 = arith.constant 0 : index
    %10 = vector.load %arg5[%c0_9, %c0_10] : memref<1x32xf32, #tpu.memory_space<vmem>>, vector<1x32xf32>
    %11 = vector.broadcast %10 : vector<1x32xf32> to vector<16x32xf32>
    %12 = arith.addf %9, %11 : vector<16x32xf32>
    %c0_11 = arith.constant 0 : index
    %c0_12 = arith.constant 0 : index
    %13 = vector.load %arg6[%c0_11, %c0_12] : memref<16x32xf32, #tpu.memory_space<vmem>>, vector<16x32xf32>
    tpu.vector_store %arg6[%c0_11, %c0_12], %12 {strides = array<i32>} : memref<16x32xf32, #tpu.memory_space<vmem>>, vector<16x32xf32>,
    return
  }
  func.func @transform_0(%arg0: i32) -> (i32, i32) {
    %c0_i32 = arith.constant 0 : i32
    %c0_i32_0 = arith.constant 0 : i32
    return %arg0, %c0_i32 : i32, i32
  }
  func.func @transform_1(%arg0: i32) -> (i32, i32) {
    %c0_i32 = arith.constant 0 : i32
    %c0_i32_0 = arith.constant 0 : i32
    %c0_i32_1 = arith.constant 0 : i32
    return %c0_i32, %c0_i32_0 : i32, i32
  }
  func.func @transform_2(%arg0: i32) -> (i32, i32) {
    %c0_i32 = arith.constant 0 : i32
    %c0_i32_0 = arith.constant 0 : i32
    %c0_i32_1 = arith.constant 0 : i32
    return %c0_i32, %c0_i32_0 : i32, i32
  }
  func.func @transform_3(%arg0: i32) -> (i32, i32) {
    %c0_i32 = arith.constant 0 : i32
    %c0_i32_0 = arith.constant 0 : i32
    %c0_i32_1 = arith.constant 0 : i32
    return %c0_i32, %c0_i32_0 : i32, i32
  }
  func.func @transform_4(%arg0: i32) -> (i32, i32) {
    %c0_i32 = arith.constant 0 : i32
    %c0_i32_0 = arith.constant 0 : i32
    %c0_i32_1 = arith.constant 0 : i32
    return %c0_i32, %c0_i32_0 : i32, i32
  }
  func.func @transform_5(%arg0: i32) -> (i32, i32) {
    %c0_i32 = arith.constant 0 : i32
    %c0_i32_0 = arith.constant 0 : i32
    return %arg0, %c0_i32 : i32, i32
  }
}

</mosaic_0001>

<llo_original>
// kernel: tpu_custom_call.1
$region0: #{tpu_custom_call.1}
  #allocation0 [shape = 'u32[]', space=smem, size = 0x4, offset = 0x4, fixed_abs, tag = 'smem constant byte address 0x4 - core index']
  #allocation1 [shape = 'u32[144,128]{1,0:T(1,128)}', space=vmem, size = 0x12000, scoped, tag = 'internal scratch']
  %s0 = inlined_call_operand.vmem [shape: f32[16,32], index: 0, kind: input, shape index: {}]
  %s1 = inlined_call_operand.vmem [shape: f32[64,32], index: 1, kind: input, shape index: {}]
  %s2 = inlined_call_operand.vmem [shape: f32[1,64], index: 2, kind: input, shape index: {}]
  %s3 = inlined_call_operand.vmem [shape: f32[64,32], index: 3, kind: input, shape index: {}]
  %s4 = inlined_call_operand.vmem [shape: f32[1,32], index: 4, kind: input, shape index: {}]
  %s5 = inlined_call_operand.hbm [shape: f32[16,32], index: 5, kind: output, shape index: {}]
  %s6 = sld [smem:[#allocation0]]
  $region30: #{tpu_custom_call.1} parent=0
    _
  %s8 = ssub.s32 1, %s6
  %s9 = scalar_select 0, %s8, %s6
  $region1: #{tpu_custom_call.1} parent=0
    #allocation2 [shape = 'u8[8192]{0}', space=vmem, size = 0x2000, scoped, tag = 'output window, operand 0, single buffered']
    #allocation3 [shape = 's32[1]{0}', space=sflag, size = 0x4, scoped, tag = 'scoped memory for tpu_custom_call.1']
    %10 = vsyncpa [#allocation3], 0
    // Predicated region
    $region2: #{tpu_custom_call.1} parent=1 // pred_check
      _
    $region3: #{tpu_custom_call.1} parent=1 // pred_check_branch
      %12 = sbr.rel (0) target = $region5
    $region4: #{tpu_custom_call.1} parent=1 // pred_region
      _
    $region5: #{tpu_custom_call.1} parent=1 // pred_fallthru
      _
    // Predicated region
    $region6: #{tpu_custom_call.1} parent=1 // pred_check
      _
    $region7: #{tpu_custom_call.1} parent=1 // pred_check_branch
      %14 = sbr.rel (0) target = $region9
    $region8: #{tpu_custom_call.1} parent=1 // pred_region
      _
    $region9: #{tpu_custom_call.1} parent=1 // pred_fallthru
      _
    // Predicated region
    $region10: #{tpu_custom_call.1} parent=1 // pred_check
      _
    $region11: #{tpu_custom_call.1} parent=1 // pred_check_branch
      %16 = sbr.rel (0) target = $region13
    $region12: #{tpu_custom_call.1} parent=1 // pred_region
      _
    $region13: #{tpu_custom_call.1} parent=1 // pred_fallthru
      _
    // Predicated region
    $region14: #{tpu_custom_call.1} parent=1 // pred_check
      _
    $region15: #{tpu_custom_call.1} parent=1 // pred_check_branch
      %18 = sbr.rel (0) target = $region17
    $region16: #{tpu_custom_call.1} parent=1 // pred_region
      _
    $region17: #{tpu_custom_call.1} parent=1 // pred_fallthru
      _
    // Predicated region
    $region18: #{tpu_custom_call.1} parent=1 // pred_check
      _
    $region19: #{tpu_custom_call.1} parent=1 // pred_check_branch
      %20 = sbr.rel (0) target = $region21
    $region20: #{tpu_custom_call.1} parent=1 // pred_region
      _
    $region21: #{tpu_custom_call.1} parent=1 // pred_fallthru
      _
    %v21 = vld [vmem:[%s0] sm:$0xff]
    %v22 = vld [vmem:[%s0 + $0x8] sm:$0xff]
    %v23 = vld [vmem:[%s1] sm:$0xff]
    %v24 = vld [vmem:[%s1 + $0x8] sm:$0xff]
    %v25 = vld [vmem:[%s1 + $0x10] sm:$0xff]
    %v26 = vld [vmem:[%s1 + $0x18] sm:$0xff]
    %v27 = vld [vmem:[%s1 + $0x20] sm:$0xff]
    %v28 = vld [vmem:[%s1 + $0x28] sm:$0xff]
    %v29 = vld [vmem:[%s1 + $0x30] sm:$0xff]
    %v30 = vld [vmem:[%s1 + $0x38] sm:$0xff]
    %v31 = vld [vmem:[%s2] sm:$0x1]
    %v33 = vlaneseq
    %v34 = vshrl.u32 %v33, 7
    %v35 = vsub.s32 0, %v34
    %v36 = vrot.slane %v31, %v35
    %vm38 = vcmask 261120
    %v40 = vsel %vm38, %v21, 0
    %v43 = vsel %vm38, %v22, 0
    %v46 = vsel %vm38, %v23, 0
    %v49 = vsel %vm38, %v24, 0
    %v52 = vsel %vm38, %v25, 0
    %v55 = vsel %vm38, %v26, 0
    %v58 = vsel %vm38, %v27, 0
    %v61 = vsel %vm38, %v28, 0
    %v64 = vsel %vm38, %v29, 0
    %v67 = vsel %vm38, %v30, 0
    %69 = vmatprep.subr.mxu0 0.0
    %70 = vmatpush1.xpose.msra.mxu0 0.0
    %71 = vmatprep.subr.mxu0 0.0
    %72 = vmatpush1.xpose.msra.mxu0 0.0
    %73 = vmatprep.subr.mxu0 0.0
    %74 = vmatpush1.xpose.msra.mxu0 0.0
    %75 = vmatprep.subr.mxu0 0.0
    %76 = vmatpush1.xpose.msra.mxu0 0.0
    %77 = vmatprep.subr.mxu0 0.0
    %78 = vmatpush1.xpose.msra.mxu0 0.0
    %79 = vmatprep.subr.mxu0 0.0
    %80 = vmatpush1.xpose.msra.mxu0 0.0
    %81 = vmatprep.subr.mxu0 0.0
    %82 = vmatpush1.xpose.msra.mxu0 0.0
    %83 = vmatprep.subr.mxu0 0.0
    %84 = vmatpush1.xpose.msra.mxu0 0.0
    %85 = vmatprep.subr.mxu0 0.0
    %86 = vmatpush1.xpose.msra.mxu0 %v67
    %87 = vmatprep.subr.mxu0 0.0
    %88 = vmatpush1.xpose.msra.mxu0 %v64
    %89 = vmatprep.subr.mxu0 0.0
    %90 = vmatpush1.xpose.msra.mxu0 %v61
    %91 = vmatprep.subr.mxu0 0.0
    %92 = vmatpush1.xpose.msra.mxu0 %v58
    %93 = vmatprep.subr.mxu0 0.0
    %94 = vmatpush1.xpose.msra.mxu0 %v55
    %95 = vmatprep.subr.mxu0 0.0
    %96 = vmatpush1.xpose.msra.mxu0 %v52
    %97 = vmatprep.subr.mxu0 0.0
    %98 = vmatpush1.xpose.msra.mxu0 %v49
    %99 = vmatprep.subr.mxu0 0.0
    %100 = vmatpush1.xpose.msra.mxu0 %v46
    %101 = vmatprep.subr.mxu0 0.0
    %102 = vmatpush2.xpose.msra.mxu0 0.0
    %103 = vmatprep.subr.mxu0 0.0
    %104 = vmatpush2.xpose.msra.mxu0 0.0
    %105 = vmatprep.subr.mxu0 0.0
    %106 = vmatpush2.xpose.msra.mxu0 0.0
    %107 = vmatprep.subr.mxu0 0.0
    %108 = vmatpush2.xpose.msra.mxu0 0.0
    %109 = vmatprep.subr.mxu0 0.0
    %110 = vmatpush2.xpose.msra.mxu0 0.0
    %111 = vmatprep.subr.mxu0 0.0
    %112 = vmatpush2.xpose.msra.mxu0 0.0
    %113 = vmatprep.subr.mxu0 0.0
    %114 = vmatpush2.xpose.msra.mxu0 0.0
    %115 = vmatprep.subr.mxu0 0.0
    %116 = vmatpush2.xpose.msra.mxu0 0.0
    %117 = vmatprep.subr.mxu0 0.0
    %118 = vmatpush2.xpose.msra.mxu0 0.0
    %119 = vmatprep.subr.mxu0 0.0
    %120 = vmatpush2.xpose.msra.mxu0 0.0
    %121 = vmatprep.subr.mxu0 0.0
    %122 = vmatpush2.xpose.msra.mxu0 0.0
    %123 = vmatprep.subr.mxu0 0.0
    %124 = vmatpush2.xpose.msra.mxu0 0.0
    %125 = vmatprep.subr.mxu0 0.0
    %126 = vmatpush2.xpose.msra.mxu0 0.0
    %127 = vmatprep.subr.mxu0 0.0
    %128 = vmatpush2.xpose.msra.mxu0 0.0
    %129 = vmatprep.subr.mxu0 0.0
    %130 = vmatpush2.xpose.msra.mxu0 0.0
    %131 = vmatprep.subr.mxu0 0.0
    %132 = vmatpush2.xpose.msra.mxu0 0.0
    %133 = vmatprep.mubr.f32.mxu0 0.0
    %134 = vmatmul.mubr.f32.gmra.mxu0 %v40
    %v135 = vpop.f32.mrf.mxu0
    %v136 = vadd.f32 %v36, %v135
    %v137 = vpop.f32.mrf.mxu0
    %138 = vmatprep.mubr.f32.mxu0 0.0
    %139 = vmatmul.mubr.f32.gmra.mxu0 %v43
    %v140 = vpop.f32.mrf.mxu0
    %v141 = vadd.f32 %v36, %v140
    %v142 = vpop.f32.mrf.mxu0
    %143 = vdwg.mxu0
    %v144 = vmax.f32 %v136, 0.0
    %v145 = vmax.f32 %v141, 0.0
    %v146 = vld [vmem:[%s3] sm:$0xff]
    %v147 = vld [vmem:[%s3 + $0x8] sm:$0xff]
    %v148 = vld [vmem:[%s3 + $0x10] sm:$0xff]
    %v149 = vld [vmem:[%s3 + $0x18] sm:$0xff]
    %v150 = vld [vmem:[%s3 + $0x20] sm:$0xff]
    %v151 = vld [vmem:[%s3 + $0x28] sm:$0xff]
    %v152 = vld [vmem:[%s3 + $0x30] sm:$0xff]
    %v153 = vld [vmem:[%s3 + $0x38] sm:$0xff]
    %v154 = vld [vmem:[%s4] sm:$0x1]
    %v156 = vlaneseq
    %v157 = vshrl.u32 %v156, 7
    %v158 = vsub.s32 0, %v157
    %v159 = vrot.slane %v154, %v158
    %vm161 = vcmask 523264
    %v163 = vsel %vm161, %v144, 0
    %v166 = vsel %vm161, %v145, 0
    %168 = vmatprep.subr.mxu0 0.0
    %169 = vmatpush1.msra.mxu0 0.0
    %170 = vmatprep.subr.mxu0 0.0
    %171 = vmatpush1.msra.mxu0 0.0
    %172 = vmatprep.subr.mxu0 0.0
    %173 = vmatpush1.msra.mxu0 0.0
    %174 = vmatprep.subr.mxu0 0.0
    %175 = vmatpush1.msra.mxu0 0.0
    %176 = vmatprep.subr.mxu0 0.0
    %177 = vmatpush1.msra.mxu0 0.0
    %178 = vmatprep.subr.mxu0 0.0
    %179 = vmatpush1.msra.mxu0 0.0
    %180 = vmatprep.subr.mxu0 0.0
    %181 = vmatpush1.msra.mxu0 0.0
    %182 = vmatprep.subr.mxu0 0.0
    %183 = vmatpush1.msra.mxu0 0.0
    %184 = vmatprep.subr.mxu0 0.0
    %185 = vmatpush1.msra.mxu0 %v153
    %186 = vmatprep.subr.mxu0 0.0
    %187 = vmatpush1.msra.mxu0 %v152
    %188 = vmatprep.subr.mxu0 0.0
    %189 = vmatpush1.msra.mxu0 %v151
    %190 = vmatprep.subr.mxu0 0.0
    %191 = vmatpush1.msra.mxu0 %v150
    %192 = vmatprep.subr.mxu0 0.0
    %193 = vmatpush1.msra.mxu0 %v149
    %194 = vmatprep.subr.mxu0 0.0
    %195 = vmatpush1.msra.mxu0 %v148
    %196 = vmatprep.subr.mxu0 0.0
    %197 = vmatpush1.msra.mxu0 %v147
    %198 = vmatprep.subr.mxu0 0.0
    %199 = vmatpush1.msra.mxu0 %v146
    %200 = vmatprep.subr.mxu0 0.0
    %201 = vmatpush2.msra.mxu0 0.0
    %202 = vmatprep.subr.mxu0 0.0
    %203 = vmatpush2.msra.mxu0 0.0
    %204 = vmatprep.subr.mxu0 0.0
    %205 = vmatpush2.msra.mxu0 0.0
    %206 = vmatprep.subr.mxu0 0.0
    %207 = vmatpush2.msra.mxu0 0.0
    %208 = vmatprep.subr.mxu0 0.0
    %209 = vmatpush2.msra.mxu0 0.0
    %210 = vmatprep.subr.mxu0 0.0
    %211 = vmatpush2.msra.mxu0 0.0
    %212 = vmatprep.subr.mxu0 0.0
    %213 = vmatpush2.msra.mxu0 0.0
    %214 = vmatprep.subr.mxu0 0.0
    %215 = vmatpush2.msra.mxu0 0.0
    %216 = vmatprep.subr.mxu0 0.0
    %217 = vmatpush2.msra.mxu0 0.0
    %218 = vmatprep.subr.mxu0 0.0
    %219 = vmatpush2.msra.mxu0 0.0
    %220 = vmatprep.subr.mxu0 0.0
    %221 = vmatpush2.msra.mxu0 0.0
    %222 = vmatprep.subr.mxu0 0.0
    %223 = vmatpush2.msra.mxu0 0.0
    %224 = vmatprep.subr.mxu0 0.0
    %225 = vmatpush2.msra.mxu0 0.0
    %226 = vmatprep.subr.mxu0 0.0
    %227 = vmatpush2.msra.mxu0 0.0
    %228 = vmatprep.subr.mxu0 0.0
    %229 = vmatpush2.msra.mxu0 0.0
    %230 = vmatprep.subr.mxu0 0.0
    %231 = vmatpush2.msra.mxu0 0.0
    %232 = vmatprep.mubr.f32.mxu0 0.0
    %233 = vmatmul.mubr.f32.gmra.mxu0 %v163
    %v234 = vpop.f32.mrf.mxu0
    %v235 = vadd.f32 %v159, %v234
    %v236 = vpop.f32.mrf.mxu0
    %237 = vmatprep.mubr.f32.mxu0 0.0
    %238 = vmatmul.mubr.f32.gmra.mxu0 %v166
    %v239 = vpop.f32.mrf.mxu0
    %v240 = vadd.f32 %v159, %v239
    %v241 = vpop.f32.mrf.mxu0
    %242 = vdwg.mxu0
    %243 = vst.msk [vmem:[#allocation2] sm:$0xff] %vm38, %v235
    %244 = vst.msk [vmem:[#allocation2 + $0x8] sm:$0xff] %vm38, %v240
    // Predicated region
    $region22: #{tpu_custom_call.1} parent=1 // pred_check
      _
    $region23: #{tpu_custom_call.1} parent=1 // pred_check_branch
      %246 = sbr.rel (0) target = $region25
    $region24: #{tpu_custom_call.1} parent=1 // pred_region
      %s248 = ssub.s32 256, 256
      %249 = vsyncadd [#allocation3], %s248
      %s250 = sshll.u32 [#allocation2], 4
      %s251 = int_to_ptr.vmem [resolvable:$true] %s250
      %256 = dma.vmem_to_hbm [thread:$0]  %s251, 256, %s5, [#allocation3], 128, 128, 8
    $region25: #{tpu_custom_call.1} parent=1 // pred_fallthru
      _
    // Predicated region
    $region26: #{tpu_custom_call.1} parent=1 // pred_check
      _
    $region27: #{tpu_custom_call.1} parent=1 // pred_check_branch
      %258 = sbr.rel (0) target = $region29
    $region28: #{tpu_custom_call.1} parent=1 // pred_region
      %259 = dma.done [#allocation3], 256
    $region29: #{tpu_custom_call.1} parent=1 // pred_fallthru
      _
    %260 = vsyncpa [#allocation3], 1

</llo_original>
